<compile_context>
chip_gen: v5e
topology: v5e:2x2
jax: 0.10.0
libtpu: 0.0.40
codegen_flags: <defaults>
</compile_context>

<pallas_src>
import jax
import jax.numpy as jnp
import numpy as np
from jax.experimental import pallas as pl
from jax.experimental.pallas import tpu as pltpu

NEG_SLOPE = 0.01  # nn.LeakyReLU() default negative_slope


def _leaky(v):
    return jnp.where(v >= 0, v, NEG_SLOPE * v)


# ----------------------------------------------------------------------------
# Pallas kernel: full per-batch-element forward (conv1 -> fc1 -> fc2 -> convT
# channel contraction), all activations fused.
# ----------------------------------------------------------------------------
def _fused_forward_kernel(p_ref, w1_ref, b1_ref, fw1_ref, fb1_ref,
                          fw2_ref, fb2_ref, wt_ref, z_ref):
    patches = p_ref[0]                                               # (9, P)

    # conv1 as (30,9)@(9,P) + bias + LeakyReLU -> (channel, spatial) layout.
    a = jnp.dot(w1_ref[...], patches, preferred_element_type=jnp.float32)
    a = _leaky(a + b1_ref[...])                                      # (30, P)
    # TODO(synk): Dropout2d(p=0.25) is identity in eval mode; training-mode RNG dropout not implemented.

    # fc1 + Tanh
    h = jnp.dot(a, fw1_ref[...], preferred_element_type=jnp.float32)
    h = jnp.tanh(h + fb1_ref[...])                                   # (30, hidden)

    # fc2 + Tanh, then (after Unflatten, elementwise) LeakyReLU
    c = jnp.dot(h, fw2_ref[...], preferred_element_type=jnp.float32)
    c = _leaky(jnp.tanh(c + fb2_ref[...]))                           # (30, P)

    # ConvTranspose2d channel contraction: Z[k, p] = sum_c Wt[c, 0, ki, kj] * C[c, p]
    z = jnp.dot(wt_ref[...], c, preferred_element_type=jnp.float32)  # (9, P)
    z_ref[0] = z.astype(z_ref.dtype)


def fused_forward_core(patches, w1m, b1, fw1, fb1, fw2, fb2, wtT):
    n, k2, p = patches.shape
    c_mid = w1m.shape[0]
    hidden = fw1.shape[1]

    # VMEM budget: 2-deep pipelined in/out tiles + (possibly double-buffered)
    # resident weights + live intermediates; capped below v7x's 64 MiB physical.
    est = 4 * (4 * k2 * p                                        # patches + z tiles
               + 2 * (c_mid * k2 + c_mid + p * hidden + hidden
                      + hidden * p + p + k2 * c_mid)             # weights / biases
               + 2 * c_mid * p + c_mid * hidden)                 # intermediates
    vmem_limit = int(min(max(est + (8 << 20), 32 << 20), 48 << 20))

    return pl.pallas_call(
        _fused_forward_kernel,
        out_shape=jax.ShapeDtypeStruct((n, k2, p), patches.dtype),
        grid_spec=pltpu.PrefetchScalarGridSpec(
            num_scalar_prefetch=0,
            grid=(n,),
            in_specs=[
                pl.BlockSpec((1, k2, p), lambda i: (i, 0, 0)),   # per-element patches
                pl.BlockSpec((c_mid, k2), lambda i: (0, 0)),     # conv1 weight (30,9)
                pl.BlockSpec((c_mid, 1), lambda i: (0, 0)),      # conv1 bias  (30,1)
                pl.BlockSpec((p, hidden), lambda i: (0, 0)),     # fc1 weight^T
                pl.BlockSpec((1, hidden), lambda i: (0, 0)),     # fc1 bias
                pl.BlockSpec((hidden, p), lambda i: (0, 0)),     # fc2 weight^T
                pl.BlockSpec((1, p), lambda i: (0, 0)),          # fc2 bias
                pl.BlockSpec((k2, c_mid), lambda i: (0, 0)),     # convT weight^T (9,30)
            ],
            out_specs=pl.BlockSpec((1, k2, p), lambda i: (i, 0, 0)),
        ),
        compiler_params=pltpu.CompilerParams(
            dimension_semantics=("parallel",),
            vmem_limit_bytes=vmem_limit),
    )(patches, w1m, b1, fw1, fb1, fw2, fb2, wtT)


# ----------------------------------------------------------------------------
# XLA glue (data movement only)
# ----------------------------------------------------------------------------
def _conv1_patches(x, kh, kw, sh, sw):
    """x: (N, 1, H, W) -> patches (N, kh*kw, Ho*Wo) for a VALID strided conv."""
    n, _, h, w = x.shape
    ho = (h - kh) // sh + 1
    wo = (w - kw) // sw + 1
    cols = []
    for ki in range(kh):
        for kj in range(kw):
            cols.append(x[:, 0,
                          ki:ki + sh * (ho - 1) + 1:sh,
                          kj:kj + sw * (wo - 1) + 1:sw])             # (N, Ho, Wo)
    patches = jnp.stack(cols, axis=1)                                # (N, 9, Ho, Wo)
    return patches.reshape(n, kh * kw, ho * wo), ho, wo


def _convT_assemble(z, h1, w1):
    """Stride-2 / output_padding=1 spatial interleave of the per-tap planes.

    z: (N, 9, h1, w1) with tap index k = ki*3 + kj.
    Returns (N, 1, 2*h1+2, 2*w1+2):  out[2h+ki, 2w+kj] += z[k, h, w].
    """
    n = z.shape[0]

    def pad(a, top, left):
        return jnp.pad(a, ((0, 0), (top, 1 - top), (left, 1 - left)))

    zk = [z[:, k] for k in range(9)]                                 # (N, h1, w1)
    ee = pad(zk[0], 0, 0) + pad(zk[2], 0, 1) + pad(zk[6], 1, 0) + pad(zk[8], 1, 1)
    eo = pad(zk[1], 0, 0) + pad(zk[7], 1, 0)
    oe = pad(zk[3], 0, 0) + pad(zk[5], 0, 1)
    oo = pad(zk[4], 0, 0)

    rows_even = jnp.stack([ee, eo], axis=-1).reshape(n, h1 + 1, 2 * (w1 + 1))
    rows_odd = jnp.stack([oe, oo], axis=-1).reshape(n, h1 + 1, 2 * (w1 + 1))
    out = jnp.stack([rows_even, rows_odd], axis=2)
    out = out.reshape(n, 2 * (h1 + 1), 2 * (w1 + 1))
    return out[:, None, :, :]


# ----------------------------------------------------------------------------
# Forward pass (Pallas path)
# ----------------------------------------------------------------------------
def convnet_forward(x, params):
    n = x.shape[0]
    c_mid, _, kh, kw = params["conv1_w"].shape                       # (30, 1, 3, 3)
    hidden = params["fc1_w"].shape[0]

    patches, h1, w1 = _conv1_patches(x, kh, kw, 2, 2)                # (N, 9, P)
    p = h1 * w1

    w1m = params["conv1_w"].reshape(c_mid, kh * kw)                  # (30, 9)
    b1 = params["conv1_b"].reshape(c_mid, 1)
    fw1 = params["fc1_w"].T                                          # (P, hidden)
    fb1 = params["fc1_b"].reshape(1, hidden)
    fw2 = params["fc2_w"].T                                          # (hidden, P)
    fb2 = params["fc2_b"].reshape(1, p)
    wtT = params["convT1_w"].reshape(c_mid, kh * kw).T               # (9, 30)

    z = fused_forward_core(patches, w1m, b1, fw1, fb1, fw2, fb2, wtT)
    z = z.reshape(n, kh * kw, h1, w1)

    out = _convT_assemble(z, h1, w1) + params["convT1_b"].reshape(1, 1, 1, 1)
    return _leaky(out)


# ----------------------------------------------------------------------------
# Pure-JAX reference (independent XLA conv path) for a correctness check
# ----------------------------------------------------------------------------
def convnet_reference(x, params):
    y = jax.lax.conv_general_dilated(
        x, params["conv1_w"], window_strides=(2, 2), padding="VALID",
        dimension_numbers=("NCHW", "OIHW", "NCHW"))
    y = _leaky(y + params["conv1_b"].reshape(1, -1, 1, 1))
    n, c, h1, w1 = y.shape
    y = y.reshape(n, c, h1 * w1)
    y = jnp.tanh(y @ params["fc1_w"].T + params["fc1_b"])
    y = jnp.tanh(y @ params["fc2_w"].T + params["fc2_b"])
    y = _leaky(y.reshape(n, c, h1, w1))
    wc = params["convT1_w"].transpose(1, 0, 2, 3)[:, :, ::-1, ::-1]
    out = jax.lax.conv_general_dilated(
        y, wc, window_strides=(1, 1), padding=((2, 3), (2, 3)),
        lhs_dilation=(2, 2), dimension_numbers=("NCHW", "OIHW", "NCHW"))
    return _leaky(out + params["convT1_b"].reshape(1, -1, 1, 1))


# ----------------------------------------------------------------------------
# Deterministic parameter init (xavier_uniform weights, uniform biases)
# ----------------------------------------------------------------------------
def init_params(key, nlats, nlons, hidden):
    h1 = (nlats - 3) // 2 + 1
    w1 = (nlons - 3) // 2 + 1
    p = h1 * w1
    ks = jax.random.split(key, 8)

    def xavier(k, shape, fan_in, fan_out):
        bound = float(np.sqrt(6.0 / (fan_in + fan_out)))
        return jax.random.uniform(k, shape, jnp.float32, -bound, bound)

    def bias(k, shape, fan_in):
        bound = float(1.0 / np.sqrt(fan_in))
        return jax.random.uniform(k, shape, jnp.float32, -bound, bound)

    return {
        "conv1_w": xavier(ks[0], (30, 1, 3, 3), 1 * 9, 30 * 9),
        "conv1_b": bias(ks[1], (30,), 1 * 9),
        "fc1_w": xavier(ks[2], (hidden, p), p, hidden),
        "fc1_b": bias(ks[3], (hidden,), p),
        "fc2_w": xavier(ks[4], (p, hidden), hidden, p),
        "fc2_b": bias(ks[5], (p,), hidden),
        "convT1_w": xavier(ks[6], (30, 1, 3, 3), 30 * 9, 1 * 9),
        "convT1_b": bias(ks[7], (1,), 30 * 9),
    }


if __name__ == "__main__":
    # Small shapes, same structure as the module (full model: nlats=144,
    # nlons=192, hidden=200, in_channels=1, mid_channels=30).
    batch, nlats, nlons, hidden = 2, 16, 16, 32
    key = jax.random.PRNGKey(0)
    kx, kp = jax.random.split(key)
    x = jax.random.normal(kx, (batch, 1, nlats, nlons), jnp.float32)
    params = init_params(kp, nlats, nlons, hidden)

    fwd = jax.jit(convnet_forward)
    out = jax.block_until_ready(fwd(x, params))
    assert out.shape == (batch, 1, nlats, nlons), out.shape

    ref = jax.block_until_ready(convnet_reference(x, params))
    np.testing.assert_allclose(np.asarray(out), np.asarray(ref),
                               rtol=1e-4, atol=1e-4)
    print("KERNEL_OK")
</pallas_src>

<mosaic_0001>
module attributes {stable_mosaic.version = 11 : i64} {
  func.func @_fused_forward_kernel(%arg0: i32, %arg1: memref<1x9x49xf32, #tpu.memory_space<vmem>>, %arg2: memref<30x9xf32, #tpu.memory_space<vmem>>, %arg3: memref<30x1xf32, #tpu.memory_space<vmem>>, %arg4: memref<49x32xf32, #tpu.memory_space<vmem>>, %arg5: memref<1x32xf32, #tpu.memory_space<vmem>>, %arg6: memref<32x49xf32, #tpu.memory_space<vmem>>, %arg7: memref<1x49xf32, #tpu.memory_space<vmem>>, %arg8: memref<9x30xf32, #tpu.memory_space<vmem>>, %arg9: memref<1x9x49xf32, #tpu.memory_space<vmem>>) attributes {dimension_semantics = [#tpu.dimension_semantics<parallel>], iteration_bounds = array<i64: 2>, scalar_prefetch = 0 : i64, scratch_operands = 0 : i64, tpu.core_type = #tpu.core_type<tc>, window_params = [{transform_indices = @transform_0, window_bounds = array<i64: 1, 9, 49>}, {pipeline_mode = #tpu.pipeline_mode<synchronous>, transform_indices = @transform_1, window_bounds = array<i64: 30, 9>}, {pipeline_mode = #tpu.pipeline_mode<synchronous>, transform_indices = @transform_2, window_bounds = array<i64: 30, 1>}, {pipeline_mode = #tpu.pipeline_mode<synchronous>, transform_indices = @transform_3, window_bounds = array<i64: 49, 32>}, {pipeline_mode = #tpu.pipeline_mode<synchronous>, transform_indices = @transform_4, window_bounds = array<i64: 1, 32>}, {pipeline_mode = #tpu.pipeline_mode<synchronous>, transform_indices = @transform_5, window_bounds = array<i64: 32, 49>}, {pipeline_mode = #tpu.pipeline_mode<synchronous>, transform_indices = @transform_6, window_bounds = array<i64: 1, 49>}, {pipeline_mode = #tpu.pipeline_mode<synchronous>, transform_indices = @transform_7, window_bounds = array<i64: 9, 30>}, {transform_indices = @transform_8, window_bounds = array<i64: 1, 9, 49>}]} {
    %c0 = arith.constant 0 : index
    %c0_0 = arith.constant 0 : index
    %c0_1 = arith.constant 0 : index
    %0 = vector.load %arg1[%c0, %c0_0, %c0_1] : memref<1x9x49xf32, #tpu.memory_space<vmem>>, vector<1x9x49xf32>
    %1 = vector.shape_cast %0 : vector<1x9x49xf32> to vector<9x49xf32>
    %c0_2 = arith.constant 0 : index
    %c0_3 = arith.constant 0 : index
    %2 = vector.load %arg2[%c0_2, %c0_3] : memref<30x9xf32, #tpu.memory_space<vmem>>, vector<30x9xf32>
    %cst = arith.constant dense<0.000000e+00> : vector<30x49xf32>
    %3 = tpu.matmul %2, %1, %cst {dimension_numbers = #tpu.dot_dimension_numbers<[1], [0], [0], [1], [0, 0, 1, 1], [], []>} : vector<30x9xf32>, vector<9x49xf32>, vector<30x49xf32> -> vector<30x49xf32>
    %c0_4 = arith.constant 0 : index
    %c0_5 = arith.constant 0 : index
    %4 = vector.load %arg3[%c0_4, %c0_5] : memref<30x1xf32, #tpu.memory_space<vmem>>, vector<30x1xf32>
    %5 = vector.broadcast %4 : vector<30x1xf32> to vector<30x49xf32>
    %6 = arith.addf %3, %5 : vector<30x49xf32>
    %cst_6 = arith.constant 0.000000e+00 : f32
    %7 = vector.broadcast %cst_6 : f32 to vector<30x49xf32>
    %8 = arith.cmpf oge, %6, %7 : vector<30x49xf32>
    %cst_7 = arith.constant 0.00999999977 : f32
    %9 = vector.broadcast %cst_7 : f32 to vector<30x49xf32>
    %10 = arith.mulf %9, %6 : vector<30x49xf32>
    %11 = arith.select %8, %6, %10 : vector<30x49xi1>, vector<30x49xf32>
    %c0_8 = arith.constant 0 : index
    %c0_9 = arith.constant 0 : index
    %12 = vector.load %arg4[%c0_8, %c0_9] : memref<49x32xf32, #tpu.memory_space<vmem>>, vector<49x32xf32>
    %cst_10 = arith.constant dense<0.000000e+00> : vector<30x32xf32>
    %13 = tpu.matmul %11, %12, %cst_10 {dimension_numbers = #tpu.dot_dimension_numbers<[1], [0], [0], [1], [0, 0, 1, 1], [], []>} : vector<30x49xf32>, vector<49x32xf32>, vector<30x32xf32> -> vector<30x32xf32>
    %c0_11 = arith.constant 0 : index
    %c0_12 = arith.constant 0 : index
    %14 = vector.load %arg5[%c0_11, %c0_12] : memref<1x32xf32, #tpu.memory_space<vmem>>, vector<1x32xf32>
    %15 = vector.broadcast %14 : vector<1x32xf32> to vector<30x32xf32>
    %16 = arith.addf %13, %15 : vector<30x32xf32>
    %17 = math.tanh %16 : vector<30x32xf32>
    %c0_13 = arith.constant 0 : index
    %c0_14 = arith.constant 0 : index
    %18 = vector.load %arg6[%c0_13, %c0_14] : memref<32x49xf32, #tpu.memory_space<vmem>>, vector<32x49xf32>
    %cst_15 = arith.constant dense<0.000000e+00> : vector<30x49xf32>
    %19 = tpu.matmul %17, %18, %cst_15 {dimension_numbers = #tpu.dot_dimension_numbers<[1], [0], [0], [1], [0, 0, 1, 1], [], []>} : vector<30x32xf32>, vector<32x49xf32>, vector<30x49xf32> -> vector<30x49xf32>
    %c0_16 = arith.constant 0 : index
    %c0_17 = arith.constant 0 : index
    %20 = vector.load %arg7[%c0_16, %c0_17] : memref<1x49xf32, #tpu.memory_space<vmem>>, vector<1x49xf32>
    %21 = vector.broadcast %20 : vector<1x49xf32> to vector<30x49xf32>
    %22 = arith.addf %19, %21 : vector<30x49xf32>
    %23 = math.tanh %22 : vector<30x49xf32>
    %cst_18 = arith.constant 0.000000e+00 : f32
    %24 = vector.broadcast %cst_18 : f32 to vector<30x49xf32>
    %25 = arith.cmpf oge, %23, %24 : vector<30x49xf32>
    %cst_19 = arith.constant 0.00999999977 : f32
    %26 = vector.broadcast %cst_19 : f32 to vector<30x49xf32>
    %27 = arith.mulf %26, %23 : vector<30x49xf32>
    %28 = arith.select %25, %23, %27 : vector<30x49xi1>, vector<30x49xf32>
    %c0_20 = arith.constant 0 : index
    %c0_21 = arith.constant 0 : index
    %29 = vector.load %arg8[%c0_20, %c0_21] : memref<9x30xf32, #tpu.memory_space<vmem>>, vector<9x30xf32>
    %cst_22 = arith.constant dense<0.000000e+00> : vector<9x49xf32>
    %30 = tpu.matmul %29, %28, %cst_22 {dimension_numbers = #tpu.dot_dimension_numbers<[1], [0], [0], [1], [0, 0, 1, 1], [], []>} : vector<9x30xf32>, vector<30x49xf32>, vector<9x49xf32> -> vector<9x49xf32>
    %c0_23 = arith.constant 0 : index
    %c0_24 = arith.constant 0 : index
    %c0_25 = arith.constant 0 : index
    %31 = vector.load %arg9[%c0_23, %c0_24, %c0_25] : memref<1x9x49xf32, #tpu.memory_space<vmem>>, vector<1x9x49xf32>
    %32 = vector.shape_cast %31 : vector<1x9x49xf32> to vector<9x49xf32>
    %33 = vector.shape_cast %30 : vector<9x49xf32> to vector<1x9x49xf32>
    tpu.vector_store %arg9[%c0_23, %c0_24, %c0_25], %33 {strides = array<i32>} : memref<1x9x49xf32, #tpu.memory_space<vmem>>, vector<1x9x49xf32>,
    return
  }
  func.func @transform_0(%arg0: i32) -> (i32, i32, i32) {
    %c0_i32 = arith.constant 0 : i32
    %c0_i32_0 = arith.constant 0 : i32
    %c0_i32_1 = arith.constant 0 : i32
    return %arg0, %c0_i32, %c0_i32_0 : i32, i32, i32
  }
  func.func @transform_1(%arg0: i32) -> (i32, i32) {
    %c0_i32 = arith.constant 0 : i32
    %c0_i32_0 = arith.constant 0 : i32
    %c0_i32_1 = arith.constant 0 : i32
    return %c0_i32, %c0_i32_0 : i32, i32
  }
  func.func @transform_2(%arg0: i32) -> (i32, i32) {
    %c0_i32 = arith.constant 0 : i32
    %c0_i32_0 = arith.constant 0 : i32
    %c0_i32_1 = arith.constant 0 : i32
    return %c0_i32, %c0_i32_0 : i32, i32
  }
  func.func @transform_3(%arg0: i32) -> (i32, i32) {
    %c0_i32 = arith.constant 0 : i32
    %c0_i32_0 = arith.constant 0 : i32
    %c0_i32_1 = arith.constant 0 : i32
    return %c0_i32, %c0_i32_0 : i32, i32
  }
  func.func @transform_4(%arg0: i32) -> (i32, i32) {
    %c0_i32 = arith.constant 0 : i32
    %c0_i32_0 = arith.constant 0 : i32
    %c0_i32_1 = arith.constant 0 : i32
    return %c0_i32, %c0_i32_0 : i32, i32
  }
  func.func @transform_5(%arg0: i32) -> (i32, i32) {
    %c0_i32 = arith.constant 0 : i32
    %c0_i32_0 = arith.constant 0 : i32
    %c0_i32_1 = arith.constant 0 : i32
    return %c0_i32, %c0_i32_0 : i32, i32
  }
  func.func @transform_6(%arg0: i32) -> (i32, i32) {
    %c0_i32 = arith.constant 0 : i32
    %c0_i32_0 = arith.constant 0 : i32
    %c0_i32_1 = arith.constant 0 : i32
    return %c0_i32, %c0_i32_0 : i32, i32
  }
  func.func @transform_7(%arg0: i32) -> (i32, i32) {
    %c0_i32 = arith.constant 0 : i32
    %c0_i32_0 = arith.constant 0 : i32
    %c0_i32_1 = arith.constant 0 : i32
    return %c0_i32, %c0_i32_0 : i32, i32
  }
  func.func @transform_8(%arg0: i32) -> (i32, i32, i32) {
    %c0_i32 = arith.constant 0 : i32
    %c0_i32_0 = arith.constant 0 : i32
    %c0_i32_1 = arith.constant 0 : i32
    return %arg0, %c0_i32, %c0_i32_0 : i32, i32, i32
  }
}

</mosaic_0001>

<llo_original>
// kernel: convnet_forward.1
$region0: #{convnet_forward.1}
  #allocation0 [shape = 'u32[]', space=smem, size = 0x4, offset = 0x4, fixed_abs, tag = 'smem constant byte address 0x4 - core index']
  #allocation1 [shape = 'u32[72,128]{1,0:T(1,128)}', space=vmem, size = 0x9000, scoped, tag = 'internal scratch']
  %s0 = inlined_call_operand.vmem [shape: f32[2,9,49], index: 0, kind: input, shape index: {}]
  %s1 = inlined_call_operand.vmem [shape: f32[30,9], index: 1, kind: input, shape index: {}]
  %s2 = inlined_call_operand.vmem [shape: f32[30,1], index: 2, kind: input, shape index: {}]
  %s3 = inlined_call_operand.vmem [shape: f32[49,32], index: 3, kind: input, shape index: {}]
  %s4 = inlined_call_operand.vmem [shape: f32[1,32], index: 4, kind: input, shape index: {}]
  %s5 = inlined_call_operand.vmem [shape: f32[32,49], index: 5, kind: input, shape index: {}]
  %s6 = inlined_call_operand.vmem [shape: f32[1,49], index: 6, kind: input, shape index: {}]
  %s7 = inlined_call_operand.vmem [shape: f32[9,30], index: 7, kind: input, shape index: {}]
  %s8 = inlined_call_operand.vmem [shape: f32[2,9,49], index: 8, kind: output, shape index: {}]
  %s9 = sld [smem:[#allocation0]]
  $region65: #{convnet_forward.1} parent=0
    _
  %s11 = ssub.s32 1, %s9
  %s12 = scalar_select 0, %s11, %s9
  loop: start=0, step=1, limit=4
  $region2: #{convnet_forward.1} parent=0 // loop_pre_header
    _
  $region3: #{convnet_forward.1} parent=0 // loop_header
    %s14 = sphi 0, %s18
    %p15 = scmp.ge.s32.totalorder %s14, 4
    %s24 = sphi 0, %s26
    %s27 = sphi 0, %s24
    %s28 = sphi 0, %s27
    %s44 = sphi 0, %s28
    %s48 = sphi 0, %s48
    %s50 = sphi 0, %s48
    %s51 = sphi 0, %s50
    %s65 = sphi 0, %s51
    %s69 = sphi 0, %s69
    %s71 = sphi 0, %s69
    %s72 = sphi 0, %s71
    %s86 = sphi 0, %s72
    %s90 = sphi 0, %s90
    %s92 = sphi 0, %s90
    %s93 = sphi 0, %s92
    %s107 = sphi 0, %s93
    %s111 = sphi 0, %s111
    %s113 = sphi 0, %s111
    %s114 = sphi 0, %s113
    %s128 = sphi 0, %s114
    %s132 = sphi 0, %s132
    %s134 = sphi 0, %s132
    %s135 = sphi 0, %s134
    %s149 = sphi 0, %s135
    %s153 = sphi 0, %s153
    %s155 = sphi 0, %s153
    %s156 = sphi 0, %s155
    %s170 = sphi 0, %s156
    %s174 = sphi 0, %s174
    %s176 = sphi 0, %s174
    %s177 = sphi 0, %s176
    %s191 = sphi 0, %s177
    %s197 = sphi 0, %s199
    %s200 = sphi 0, %s197
    %s201 = sphi 0, %s200
    %s217 = sphi 0, %s201
  $region4: #{convnet_forward.1} parent=0 // loop_header_branch
    %17 = sbr.rel (%p15) target = $region8
  $region5: #{convnet_forward.1} parent=0 // loop_body
    %s19 = ssub.s32 %s14, 1
    %s20 = ssub.s32 %s14, 2
    %s21 = sadd.s32 %s14, 1
    %s22 = ssub.s32 %s14, %s21
    %p23 = scmp.eq.s32.totalorder %s22, 0
    %s25 = sadd.s32 %s24, 1
    %s26 = scalar_select %p23, %s24, %s25
    %p29 = pneg %p23
    %p30 = scmp.eq.s32.totalorder %s14, 1
    %p31 = por %p29, %p30
    %p32 = scmp.ne.s32.totalorder %s24, %s27
    %p33 = scmp.eq.s32.totalorder %s14, 0
    %p34 = por %p32, %p33
    %p35 = scmp.ne.s32.totalorder %s24, %s27
    %p36 = scmp.eq.s32.totalorder %s19, 1
    %p37 = por %p35, %p36
    %p38 = scmp.ne.s32.totalorder %s27, %s28
    %p39 = scmp.eq.s32.totalorder %s19, 0
    %p40 = por %p38, %p39
    %p41 = scmp.ne.s32.totalorder %s27, %s28
    %p42 = scmp.eq.s32.totalorder %s20, 1
    %p43 = por %p41, %p42
    %p45 = scmp.ne.s32.totalorder %s28, %s44
    %p46 = scmp.eq.s32.totalorder %s20, 0
    %p47 = por %p45, %p46
    %s49 = sadd.s32 %s48, 1
    %p52 = scmp.eq.s32.totalorder %s14, 1
    %p53 = scmp.ne.s32.totalorder %s48, %s50
    %p54 = scmp.eq.s32.totalorder %s14, 0
    %p55 = por %p53, %p54
    %p56 = scmp.ne.s32.totalorder %s48, %s50
    %p57 = scmp.eq.s32.totalorder %s19, 1
    %p58 = por %p56, %p57
    %p59 = scmp.ne.s32.totalorder %s50, %s51
    %p60 = scmp.eq.s32.totalorder %s19, 0
    %p61 = por %p59, %p60
    %p62 = scmp.ne.s32.totalorder %s50, %s51
    %p63 = scmp.eq.s32.totalorder %s20, 1
    %p64 = por %p62, %p63
    %p66 = scmp.ne.s32.totalorder %s51, %s65
    %p67 = scmp.eq.s32.totalorder %s20, 0
    %p68 = por %p66, %p67
    %s70 = sadd.s32 %s69, 1
    %p73 = scmp.eq.s32.totalorder %s14, 1
    %p74 = scmp.ne.s32.totalorder %s69, %s71
    %p75 = scmp.eq.s32.totalorder %s14, 0
    %p76 = por %p74, %p75
    %p77 = scmp.ne.s32.totalorder %s69, %s71
    %p78 = scmp.eq.s32.totalorder %s19, 1
    %p79 = por %p77, %p78
    %p80 = scmp.ne.s32.totalorder %s71, %s72
    %p81 = scmp.eq.s32.totalorder %s19, 0
    %p82 = por %p80, %p81
    %p83 = scmp.ne.s32.totalorder %s71, %s72
    %p84 = scmp.eq.s32.totalorder %s20, 1
    %p85 = por %p83, %p84
    %p87 = scmp.ne.s32.totalorder %s72, %s86
    %p88 = scmp.eq.s32.totalorder %s20, 0
    %p89 = por %p87, %p88
    %s91 = sadd.s32 %s90, 1
    %p94 = scmp.eq.s32.totalorder %s14, 1
    %p95 = scmp.ne.s32.totalorder %s90, %s92
    %p96 = scmp.eq.s32.totalorder %s14, 0
    %p97 = por %p95, %p96
    %p98 = scmp.ne.s32.totalorder %s90, %s92
    %p99 = scmp.eq.s32.totalorder %s19, 1
    %p100 = por %p98, %p99
    %p101 = scmp.ne.s32.totalorder %s92, %s93
    %p102 = scmp.eq.s32.totalorder %s19, 0
    %p103 = por %p101, %p102
    %p104 = scmp.ne.s32.totalorder %s92, %s93
    %p105 = scmp.eq.s32.totalorder %s20, 1
    %p106 = por %p104, %p105
    %p108 = scmp.ne.s32.totalorder %s93, %s107
    %p109 = scmp.eq.s32.totalorder %s20, 0
    %p110 = por %p108, %p109
    %s112 = sadd.s32 %s111, 1
    %p115 = scmp.eq.s32.totalorder %s14, 1
    %p116 = scmp.ne.s32.totalorder %s111, %s113
    %p117 = scmp.eq.s32.totalorder %s14, 0
    %p118 = por %p116, %p117
    %p119 = scmp.ne.s32.totalorder %s111, %s113
    %p120 = scmp.eq.s32.totalorder %s19, 1
    %p121 = por %p119, %p120
    %p122 = scmp.ne.s32.totalorder %s113, %s114
    %p123 = scmp.eq.s32.totalorder %s19, 0
    %p124 = por %p122, %p123
    %p125 = scmp.ne.s32.totalorder %s113, %s114
    %p126 = scmp.eq.s32.totalorder %s20, 1
    %p127 = por %p125, %p126
    %p129 = scmp.ne.s32.totalorder %s114, %s128
    %p130 = scmp.eq.s32.totalorder %s20, 0
    %p131 = por %p129, %p130
    %s133 = sadd.s32 %s132, 1
    %p136 = scmp.eq.s32.totalorder %s14, 1
    %p137 = scmp.ne.s32.totalorder %s132, %s134
    %p138 = scmp.eq.s32.totalorder %s14, 0
    %p139 = por %p137, %p138
    %p140 = scmp.ne.s32.totalorder %s132, %s134
    %p141 = scmp.eq.s32.totalorder %s19, 1
    %p142 = por %p140, %p141
    %p143 = scmp.ne.s32.totalorder %s134, %s135
    %p144 = scmp.eq.s32.totalorder %s19, 0
    %p145 = por %p143, %p144
    %p146 = scmp.ne.s32.totalorder %s134, %s135
    %p147 = scmp.eq.s32.totalorder %s20, 1
    %p148 = por %p146, %p147
    %p150 = scmp.ne.s32.totalorder %s135, %s149
    %p151 = scmp.eq.s32.totalorder %s20, 0
    %p152 = por %p150, %p151
    %s154 = sadd.s32 %s153, 1
    %p157 = scmp.eq.s32.totalorder %s14, 1
    %p158 = scmp.ne.s32.totalorder %s153, %s155
    %p159 = scmp.eq.s32.totalorder %s14, 0
    %p160 = por %p158, %p159
    %p161 = scmp.ne.s32.totalorder %s153, %s155
    %p162 = scmp.eq.s32.totalorder %s19, 1
    %p163 = por %p161, %p162
    %p164 = scmp.ne.s32.totalorder %s155, %s156
    %p165 = scmp.eq.s32.totalorder %s19, 0
    %p166 = por %p164, %p165
    %p167 = scmp.ne.s32.totalorder %s155, %s156
    %p168 = scmp.eq.s32.totalorder %s20, 1
    %p169 = por %p167, %p168
    %p171 = scmp.ne.s32.totalorder %s156, %s170
    %p172 = scmp.eq.s32.totalorder %s20, 0
    %p173 = por %p171, %p172
    %s175 = sadd.s32 %s174, 1
    %p178 = scmp.eq.s32.totalorder %s14, 1
    %p179 = scmp.ne.s32.totalorder %s174, %s176
    %p180 = scmp.eq.s32.totalorder %s14, 0
    %p181 = por %p179, %p180
    %p182 = scmp.ne.s32.totalorder %s174, %s176
    %p183 = scmp.eq.s32.totalorder %s19, 1
    %p184 = por %p182, %p183
    %p185 = scmp.ne.s32.totalorder %s176, %s177
    %p186 = scmp.eq.s32.totalorder %s19, 0
    %p187 = por %p185, %p186
    %p188 = scmp.ne.s32.totalorder %s176, %s177
    %p189 = scmp.eq.s32.totalorder %s20, 1
    %p190 = por %p188, %p189
    %p192 = scmp.ne.s32.totalorder %s177, %s191
    %p193 = scmp.eq.s32.totalorder %s20, 0
    %p194 = por %p192, %p193
    %s195 = ssub.s32 %s14, %s21
    %p196 = scmp.eq.s32.totalorder %s195, 0
    %s198 = sadd.s32 %s197, 1
    %s199 = scalar_select %p196, %s197, %s198
    %p202 = pneg %p196
    %p203 = scmp.eq.s32.totalorder %s14, 1
    %p204 = por %p202, %p203
    %p205 = scmp.ne.s32.totalorder %s197, %s200
    %p206 = scmp.eq.s32.totalorder %s14, 0
    %p207 = por %p205, %p206
    %p208 = scmp.ne.s32.totalorder %s197, %s200
    %p209 = scmp.eq.s32.totalorder %s19, 1
    %p210 = por %p208, %p209
    %p211 = scmp.ne.s32.totalorder %s200, %s201
    %p212 = scmp.eq.s32.totalorder %s19, 0
    %p213 = por %p211, %p212
    %p214 = scmp.ne.s32.totalorder %s200, %s201
    %p215 = scmp.eq.s32.totalorder %s20, 1
    %p216 = por %p214, %p215
    %p218 = scmp.ne.s32.totalorder %s201, %s217
    %p219 = scmp.eq.s32.totalorder %s20, 0
    %p220 = por %p218, %p219
    %p221 = scmp.le.s32.totalorder 1, %s14
    %p222 = scmp.lt.s32.totalorder %s14, 3
    %p223 = pnand %p221, %p222
    %p224 = pneg %p223
    // Predicated region
    $region9: #{convnet_forward.1} parent=5 // pred_check
      _
    $region10: #{convnet_forward.1} parent=5 // pred_check_branch
      %226 = sbr.rel (%p223) target = $region12
    $region11: #{convnet_forward.1} parent=5 // pred_region
      %s227 = ssub.s32 %s14, 1
      // Predicated region
      $region13: #{convnet_forward.1} parent=11 // pred_check
        %p228 = pneg %p61
      $region14: #{convnet_forward.1} parent=11 // pred_check_branch
        %230 = sbr.rel (%p228) target = $region16
      $region15: #{convnet_forward.1} parent=11 // pred_region
        _
      $region16: #{convnet_forward.1} parent=11 // pred_fallthru
        _
      // Predicated region
      $region17: #{convnet_forward.1} parent=11 // pred_check
        %p231 = pneg %p82
      $region18: #{convnet_forward.1} parent=11 // pred_check_branch
        %233 = sbr.rel (%p231) target = $region20
      $region19: #{convnet_forward.1} parent=11 // pred_region
        _
      $region20: #{convnet_forward.1} parent=11 // pred_fallthru
        _
      // Predicated region
      $region21: #{convnet_forward.1} parent=11 // pred_check
        %p234 = pneg %p103
      $region22: #{convnet_forward.1} parent=11 // pred_check_branch
        %236 = sbr.rel (%p234) target = $region24
      $region23: #{convnet_forward.1} parent=11 // pred_region
        _
      $region24: #{convnet_forward.1} parent=11 // pred_fallthru
        _
      // Predicated region
      $region25: #{convnet_forward.1} parent=11 // pred_check
        %p237 = pneg %p124
      $region26: #{convnet_forward.1} parent=11 // pred_check_branch
        %239 = sbr.rel (%p237) target = $region28
      $region27: #{convnet_forward.1} parent=11 // pred_region
        _
      $region28: #{convnet_forward.1} parent=11 // pred_fallthru
        _
      // Predicated region
      $region29: #{convnet_forward.1} parent=11 // pred_check
        %p240 = pneg %p145
      $region30: #{convnet_forward.1} parent=11 // pred_check_branch
        %242 = sbr.rel (%p240) target = $region32
      $region31: #{convnet_forward.1} parent=11 // pred_region
        _
      $region32: #{convnet_forward.1} parent=11 // pred_fallthru
        _
      // Predicated region
      $region33: #{convnet_forward.1} parent=11 // pred_check
        %p243 = pneg %p166
      $region34: #{convnet_forward.1} parent=11 // pred_check_branch
        %245 = sbr.rel (%p243) target = $region36
      $region35: #{convnet_forward.1} parent=11 // pred_region
        _
      $region36: #{convnet_forward.1} parent=11 // pred_fallthru
        _
      // Predicated region
      $region37: #{convnet_forward.1} parent=11 // pred_check
        %p246 = pneg %p187
      $region38: #{convnet_forward.1} parent=11 // pred_check_branch
        %248 = sbr.rel (%p246) target = $region40
      $region39: #{convnet_forward.1} parent=11 // pred_region
        _
      $region40: #{convnet_forward.1} parent=11 // pred_fallthru
        _
    $region12: #{convnet_forward.1} parent=5 // pred_fallthru
      _
    %p249 = scmp.lt.s32.totalorder %s14, 2
    // Predicated region
    $region41: #{convnet_forward.1} parent=5 // pred_check
      %p250 = pneg %p249
    $region42: #{convnet_forward.1} parent=5 // pred_check_branch
      %252 = sbr.rel (%p250) target = $region44
    $region43: #{convnet_forward.1} parent=5 // pred_region
      // Predicated region
      $region45: #{convnet_forward.1} parent=43 // pred_check
        %p253 = pneg %p34
      $region46: #{convnet_forward.1} parent=43 // pred_check_branch
        %255 = sbr.rel (%p253) target = $region48
      $region47: #{convnet_forward.1} parent=43 // pred_region
        %p256 = scmp.lt.s32.totalorder %s14, 1
        %s257 = scalar_select %p256, %s14, 1
        %s258 = smul.addr %s257, 2
        %s259 = smul.addr %s258, 8
        %s260 = scalar_lea.vmem %s0, %s259
      $region48: #{convnet_forward.1} parent=43 // pred_fallthru
        _
    $region44: #{convnet_forward.1} parent=5 // pred_fallthru
      _
    %p261 = scmp.le.s32.totalorder 1, %s14
    %p262 = scmp.lt.s32.totalorder %s14, 3
    %p263 = pnand %p261, %p262
    %p264 = pneg %p263
    // Predicated region
    $region49: #{convnet_forward.1} parent=5 // pred_check
      _
    $region50: #{convnet_forward.1} parent=5 // pred_check_branch
      %266 = sbr.rel (%p263) target = $region52
    $region51: #{convnet_forward.1} parent=5 // pred_region
      %s267 = ssub.s32 %s14, 1
      %p268 = scmp.lt.s32.totalorder %s19, 1
      %s269 = scalar_select %p268, %s19, 1
      %s270 = smul.addr %s269, 2
      %s271 = smul.addr %s270, 8
      %s272 = scalar_lea.vmem %s0, %s271
      %p273 = pneg %p40
      %p274 = pneg %p37
      %p275 = pneg %p61
      %p276 = pneg %p58
      %p277 = pneg %p82
      %p278 = pneg %p79
      %p279 = pneg %p103
      %p280 = pneg %p100
      %p281 = pneg %p124
      %p282 = pneg %p121
      %p283 = pneg %p145
      %p284 = pneg %p142
      %p285 = pneg %p166
      %p286 = pneg %p163
      %p287 = pneg %p187
      %p288 = pneg %p184
      %p289 = pneg %p213
      %p290 = pneg %p210
      %p291 = scmp.lt.s32.totalorder %s19, 1
      %s292 = scalar_select %p291, %s19, 1
      %s293 = smul.addr %s292, 2
      %s294 = smul.addr %s293, 8
      %s295 = scalar_lea.vmem %s8, %s294
      %p296 = scmp.lt.s32.totalorder %s19, 1
      %s297 = scalar_select %p296, %s19, 1
      %s298 = smul.addr %s297, 2
      %s299 = smul.addr %s298, 8
      %s300 = scalar_lea.vmem %s0, %s299
      %p301 = scmp.lt.s32.totalorder %s19, 1
      %s302 = scalar_select %p301, %s19, 1
      %s303 = smul.addr %s302, 2
      %s304 = smul.addr %s303, 8
      %s305 = scalar_lea.vmem %s8, %s304
      %v306 = vld [vmem:[%s300] sm:$0xff]
      %v307 = vld [vmem:[%s300 + $0x8] sm:$0x1]
      %v308 = vld [vmem:[%s1] sm:$0xff]
      %v309 = vld [vmem:[%s1 + $0x8] sm:$0xff]
      %v310 = vld [vmem:[%s1 + $0x10] sm:$0xff]
      %v311 = vld [vmem:[%s1 + $0x18] sm:$0x3f]
      %v312 = vld [vmem:[%s2] sm:$0xff]
      %v313 = vld [vmem:[%s2 + $0x8] sm:$0xff]
      %v314 = vld [vmem:[%s2 + $0x10] sm:$0xff]
      %v315 = vld [vmem:[%s2 + $0x18] sm:$0x3f]
      %317 = vset.pattern.permute.xlu0 0
      %318 = vperm.xlu0 %317, %v312
      %v319 = vpop.permute.xlu0 %318
      %322 = vset.pattern.permute.xlu0 0
      %323 = vperm.xlu0 %322, %v313
      %v324 = vpop.permute.xlu0 %323
      %327 = vset.pattern.permute.xlu0 0
      %328 = vperm.xlu0 %327, %v314
      %v329 = vpop.permute.xlu0 %328
      %332 = vset.pattern.permute.xlu0 0
      %333 = vperm.xlu0 %332, %v315
      %v334 = vpop.permute.xlu0 %333
      %vm336 = vcmask 72704
      %v338 = vsel %vm336, %v308, 0
      %v341 = vsel %vm336, %v309, 0
      %v344 = vsel %vm336, %v310, 0
      %v347 = vsel %vm336, %v311, 0
      %vm349 = vcmask 1040384
      %v351 = vsel %vm349, %v307, 0
      %353 = vmatpush.msra.mxu0 0.0
      %354 = vmatpush.msra.mxu0 0.0
      %355 = vmatpush.msra.mxu0 0.0
      %356 = vmatpush.msra.mxu0 0.0
      %357 = vmatpush.msra.mxu0 0.0
      %358 = vmatpush.msra.mxu0 0.0
      %359 = vmatpush.msra.mxu0 0.0
      %360 = vmatpush.msra.mxu0 0.0
      %361 = vmatpush.msra.mxu0 0.0
      %362 = vmatpush.msra.mxu0 0.0
      %363 = vmatpush.msra.mxu0 0.0
      %364 = vmatpush.msra.mxu0 0.0
      %365 = vmatpush.msra.mxu0 0.0
      %366 = vmatpush.msra.mxu0 0.0
      %367 = vmatpush.msra.mxu0 %v351
      %368 = vmatpush.msra.mxu0 %v306
      %369 = vmatmul.f32.gmra.mxu0 %v338
      %v370 = vpop.f32.mrf.mxu0
      %v371 = vadd.f32 %v319, %v370
      %372 = vmatmul.f32.gmra.mxu0 %v341
      %v373 = vpop.f32.mrf.mxu0
      %v374 = vadd.f32 %v324, %v373
      %375 = vmatmul.f32.gmra.mxu0 %v344
      %v376 = vpop.f32.mrf.mxu0
      %v377 = vadd.f32 %v329, %v376
      %378 = vmatmul.f32.gmra.mxu0 %v347
      %v379 = vpop.f32.mrf.mxu0
      %v380 = vadd.f32 %v334, %v379
      %381 = vdwg.mxu0
      %vm382 = vcmp.ge.f32.partialorder %v371, 0.0
      %vm383 = vcmp.ge.f32.partialorder %v374, 0.0
      %vm384 = vcmp.ge.f32.partialorder %v377, 0.0
      %vm385 = vcmp.ge.f32.partialorder %v380, 0.0
      %v386 = vmul.f32 %v371, 0.01
      %v387 = vmul.f32 %v374, 0.01
      %v388 = vmul.f32 %v377, 0.01
      %v389 = vmul.f32 %v380, 0.01
      %v390 = vsel %vm382, %v371, %v386
      %v391 = vsel %vm383, %v374, %v387
      %v392 = vsel %vm384, %v377, %v388
      %v393 = vsel %vm385, %v380, %v389
      %v394 = vld [vmem:[%s3] sm:$0xff]
      %v395 = vld [vmem:[%s3 + $0x8] sm:$0xff]
      %v396 = vld [vmem:[%s3 + $0x10] sm:$0xff]
      %v397 = vld [vmem:[%s3 + $0x18] sm:$0xff]
      %v398 = vld [vmem:[%s3 + $0x20] sm:$0xff]
      %v399 = vld [vmem:[%s3 + $0x28] sm:$0xff]
      %v400 = vld [vmem:[%s3 + $0x30] sm:$0x1]
      %v401 = vld [vmem:[%s4] sm:$0x1]
      %v403 = vperm.slane %v401, 0
      %vm405 = vcmask 400384
      %v407 = vsel %vm405, %v390, 0
      %v410 = vsel %vm405, %v391, 0
      %v413 = vsel %vm405, %v392, 0
      %v416 = vsel %vm405, %v393, 0
      %v419 = vsel %vm349, %v400, 0
      %421 = vmatpush.msra.mxu0 0.0
      %422 = vmatpush.msra.mxu0 0.0
      %423 = vmatpush.msra.mxu0 0.0
      %424 = vmatpush.msra.mxu0 0.0
      %425 = vmatpush.msra.mxu0 0.0
      %426 = vmatpush.msra.mxu0 0.0
      %427 = vmatpush.msra.mxu0 0.0
      %428 = vmatpush.msra.mxu0 0.0
      %429 = vmatpush.msra.mxu0 0.0
      %430 = vmatpush.msra.mxu0 %v419
      %431 = vmatpush.msra.mxu0 %v399
      %432 = vmatpush.msra.mxu0 %v398
      %433 = vmatpush.msra.mxu0 %v397
      %434 = vmatpush.msra.mxu0 %v396
      %435 = vmatpush.msra.mxu0 %v395
      %436 = vmatpush.msra.mxu0 %v394
      %437 = vmatmul.f32.gmra.mxu0 %v407
      %v438 = vpop.f32.mrf.mxu0
      %v439 = vadd.f32 %v403, %v438
      %440 = vmatmul.f32.gmra.mxu0 %v410
      %v441 = vpop.f32.mrf.mxu0
      %v442 = vadd.f32 %v403, %v441
      %443 = vmatmul.f32.gmra.mxu0 %v413
      %v444 = vpop.f32.mrf.mxu0
      %v445 = vadd.f32 %v403, %v444
      %446 = vmatmul.f32.gmra.mxu0 %v416
      %v447 = vpop.f32.mrf.mxu0
      %v448 = vadd.f32 %v403, %v447
      %449 = vdwg.mxu0
      %v450 = vtanh.pop %v439
      %v451 = vtanh.pop %v442
      %v452 = vtanh.pop %v445
      %v453 = vtanh.pop %v448
      %v454 = vld [vmem:[%s5] sm:$0xff]
      %v455 = vld [vmem:[%s5 + $0x8] sm:$0xff]
      %v456 = vld [vmem:[%s5 + $0x10] sm:$0xff]
      %v457 = vld [vmem:[%s5 + $0x18] sm:$0xff]
      %v458 = vld [vmem:[%s6] sm:$0x1]
      %v460 = vperm.slane %v458, 0
      %vm462 = vcmask 261120
      %v464 = vsel %vm462, %v450, 0
      %v467 = vsel %vm462, %v451, 0
      %v470 = vsel %vm462, %v452, 0
      %v473 = vsel %vm462, %v453, 0
      %475 = vmatpush.msra.mxu0 0.0
      %476 = vmatpush.msra.mxu0 0.0
      %477 = vmatpush.msra.mxu0 0.0
      %478 = vmatpush.msra.mxu0 0.0
      %479 = vmatpush.msra.mxu0 0.0
      %480 = vmatpush.msra.mxu0 0.0
      %481 = vmatpush.msra.mxu0 0.0
      %482 = vmatpush.msra.mxu0 0.0
      %483 = vmatpush.msra.mxu0 0.0
      %484 = vmatpush.msra.mxu0 0.0
      %485 = vmatpush.msra.mxu0 0.0
      %486 = vmatpush.msra.mxu0 0.0
      %487 = vmatpush.msra.mxu0 %v457
      %488 = vmatpush.msra.mxu0 %v456
      %489 = vmatpush.msra.mxu0 %v455
      %490 = vmatpush.msra.mxu0 %v454
      %491 = vmatmul.f32.gmra.mxu0 %v464
      %v492 = vpop.f32.mrf.mxu0
      %v493 = vadd.f32 %v460, %v492
      %494 = vmatmul.f32.gmra.mxu0 %v467
      %v495 = vpop.f32.mrf.mxu0
      %v496 = vadd.f32 %v460, %v495
      %497 = vmatmul.f32.gmra.mxu0 %v470
      %v498 = vpop.f32.mrf.mxu0
      %v499 = vadd.f32 %v460, %v498
      %500 = vmatmul.f32.gmra.mxu0 %v473
      %v501 = vpop.f32.mrf.mxu0
      %v502 = vadd.f32 %v460, %v501
      %503 = vdwg.mxu0
      %v504 = vtanh.pop %v493
      %v505 = vtanh.pop %v496
      %v506 = vtanh.pop %v499
      %v507 = vtanh.pop %v502
      %vm508 = vcmp.ge.f32.partialorder %v504, 0.0
      %vm509 = vcmp.ge.f32.partialorder %v505, 0.0
      %vm510 = vcmp.ge.f32.partialorder %v506, 0.0
      %vm511 = vcmp.ge.f32.partialorder %v507, 0.0
      %v512 = vmul.f32 %v504, 0.01
      %v513 = vmul.f32 %v505, 0.01
      %v514 = vmul.f32 %v506, 0.01
      %v515 = vmul.f32 %v507, 0.01
      %v516 = vsel %vm508, %v504, %v512
      %v517 = vsel %vm509, %v505, %v513
      %v518 = vsel %vm510, %v506, %v514
      %v519 = vsel %vm511, %v507, %v515
      %v520 = vld [vmem:[%s7] sm:$0xff]
      %v521 = vld [vmem:[%s7 + $0x8] sm:$0x1]
      %vm522 = vcmask 244736
      %v524 = vsel %vm522, %v520, 0
      %v527 = vsel %vm522, %v521, 0
      %vm529 = vcmask 1045504
      %v531 = vsel %vm529, %v519, 0
      %533 = vmatpush.msra.mxu0 0.0
      %534 = vmatpush.msra.mxu0 0.0
      %535 = vmatpush.msra.mxu0 0.0
      %536 = vmatpush.msra.mxu0 0.0
      %537 = vmatpush.msra.mxu0 0.0
      %538 = vmatpush.msra.mxu0 0.0
      %539 = vmatpush.msra.mxu0 0.0
      %540 = vmatpush.msra.mxu0 0.0
      %541 = vmatpush.msra.mxu0 0.0
      %542 = vmatpush.msra.mxu0 0.0
      %543 = vmatpush.msra.mxu0 0.0
      %544 = vmatpush.msra.mxu0 0.0
      %545 = vmatpush.msra.mxu0 %v531
      %546 = vmatpush.msra.mxu0 %v518
      %547 = vmatpush.msra.mxu0 %v517
      %548 = vmatpush.msra.mxu0 %v516
      %549 = vmatmul.f32.gmra.mxu0 %v524
      %v550 = vpop.f32.mrf.mxu0
      %v551 = vadd.f32 0.0, %v550
      %552 = vmatmul.f32.gmra.mxu0 %v527
      %v553 = vpop.f32.mrf.mxu0
      %v554 = vadd.f32 0.0, %v553
      %555 = vdwg.mxu0
      %556 = vst.msk [vmem:[%s305] sm:$0xff] %vm405, %v551
      %vm557 = vcmask 393216
      %558 = vst.msk [vmem:[%s305 + $0x8] sm:$0x1] %vm557, %v554
      %p559 = scmp.lt.s32.totalorder %s19, 1
      %s560 = scalar_select %p559, %s19, 1
      %s561 = smul.addr %s560, 2
      %s562 = smul.addr %s561, 8
      %s563 = scalar_lea.vmem %s8, %s562
      // Predicated region
      $region53: #{convnet_forward.1} parent=51 // pred_check
        %p564 = pneg %p210
      $region54: #{convnet_forward.1} parent=51 // pred_check_branch
        %566 = sbr.rel (%p564) target = $region56
      $region55: #{convnet_forward.1} parent=51 // pred_region
        _
      $region56: #{convnet_forward.1} parent=51 // pred_fallthru
        _
    $region52: #{convnet_forward.1} parent=5 // pred_fallthru
      _
    %p567 = scmp.le.s32.totalorder 2, %s14
    // Predicated region
    $region57: #{convnet_forward.1} parent=5 // pred_check
      %p568 = pneg %p567
    $region58: #{convnet_forward.1} parent=5 // pred_check_branch
      %570 = sbr.rel (%p568) target = $region60
    $region59: #{convnet_forward.1} parent=5 // pred_region
      %s571 = ssub.s32 %s14, 2
      // Predicated region
      $region61: #{convnet_forward.1} parent=59 // pred_check
        %p572 = pneg %p216
      $region62: #{convnet_forward.1} parent=59 // pred_check_branch
        %574 = sbr.rel (%p572) target = $region64
      $region63: #{convnet_forward.1} parent=59 // pred_region
        %p575 = scmp.lt.s32.totalorder %s20, 1
        %s576 = scalar_select %p575, %s20, 1
        %s577 = smul.addr %s576, 2
        %s578 = smul.addr %s577, 8
        %s579 = scalar_lea.vmem %s8, %s578
      $region64: #{convnet_forward.1} parent=59 // pred_fallthru
        _
    $region60: #{convnet_forward.1} parent=5 // pred_fallthru
      _
  $region6: #{convnet_forward.1} parent=0 // loop_footer
    %s18 = sadd.s32 1, %s14
  $region7: #{convnet_forward.1} parent=0 // loop_footer_branch
    %13 = sbr.rel target = $region3
  $region8: #{convnet_forward.1} parent=0 // loop_exit
    _

</llo_original>
